<compile_context>
chip_gen: v5e
topology: v5e:2x2
jax: 0.10.0
libtpu: 0.0.40
codegen_flags: <defaults>
</compile_context>

<pallas_src>
import jax
import jax.numpy as jnp
from jax.experimental import pallas as pl
from jax.experimental.pallas import tpu as pltpu


def _round_up(a, b):
    return ((a + b - 1) // b) * b


def onep_kernel(x_ref, mask_ref, w_ref, o_ref, carry_ref):
    j = pl.program_id(1)

    # Reset the per-row running carry at the start of each sweep over N-blocks.
    @pl.when(j == 0)
    def _():
        carry_ref[...] = jnp.zeros_like(carry_ref)

    x = x_ref[...]                                            # (tm, tk), native dtype
    tk = x_ref.shape[1]

    # Block-local EXCLUSIVE cumsum along the feature dim, on the MXU:
    #   local[i, t] = sum_{s < t} x[i, s]   (within this N-block)
    local = jnp.dot(x, mask_ref[...], preferred_element_type=jnp.float32)

    # Add the running carry: sum of all columns in previous N-blocks, per row.
    res = local + carry_ref[...]                              # (tm, tk) f32

    # one_vars is resident as the full (1, n_pad) row; slice this block's columns.
    start = pl.multiple_of(j * tk, 128)
    w = w_ref[:, pl.ds(start, tk)].astype(jnp.float32)        # (1, tk) -> broadcast rows

    o_ref[...] = jax.nn.sigmoid(w * res).astype(o_ref.dtype)

    # Row-sum of this block = exclusive sum up to the last column (already in
    # res, including the old carry) + the last column itself.  Single-column
    # add instead of a full-tile cast + tk-wide reduce.
    last = tk - 1
    carry_ref[...] = res[:, last:last + 1] + x[:, last:last + 1].astype(jnp.float32)


def onep_forward(x, one_vars, *, tm=None, tk=None):
    """x: (m, N), one_vars: (1, N) -> (m, N) = sigmoid(one_vars * exclusive_cumsum(x))."""
    m, n = x.shape
    assert one_vars.shape == (1, n)

    # ---- Feature (carry) tile: multiple of 128 lanes, per-generation default. ----
    n128 = _round_up(n, 128)
    if tk is None:
        kind = ""
        try:
            kind = jax.devices()[0].device_kind.lower()
        except Exception:
            pass
        tk = 128 if "v5" in kind else 256          # v5e: 4x128 MXU; v6e/v7x: 2x256 MXU
    tk = _round_up(tk, 128)
    tk = min(tk, n128)

    # ---- Batch tile: sublane multiple, aim for >= 2 m-tiles (megacore), cap 512. ----
    itemsize = jnp.dtype(x.dtype).itemsize
    sub = 8 if itemsize >= 4 else (16 if itemsize == 2 else 32)
    m_sub = _round_up(m, sub)
    if tm is None:
        tm = min(512, _round_up(-(-m // 2), sub))
    tm = _round_up(tm, sub)
    tm = min(tm, m_sub)

    # ---- Zero-pad to full blocks: no partial tail blocks, no O(n^2) mask fallback. ----
    n_pad = _round_up(n, tk)
    m_pad = _round_up(m, tm)
    x_p = x
    if (m_pad, n_pad) != (m, n):
        x_p = jnp.pad(x, ((0, m_pad - m), (0, n_pad - n)))
    w_p = one_vars
    if n_pad != n:
        w_p = jnp.pad(one_vars, ((0, 0), (0, n_pad - n)))

    # Strictly-upper-triangular 0/1 mask, built once, resident in VMEM.
    mask = jnp.triu(jnp.ones((tk, tk), dtype=x.dtype), k=1)

    grid = (m_pad // tm, n_pad // tk)

    out = pl.pallas_call(
        onep_kernel,
        out_shape=jax.ShapeDtypeStruct((m_pad, n_pad), x.dtype),
        grid=grid,
        in_specs=[
            pl.BlockSpec((tm, tk), lambda i, j: (i, j)),      # x tile
            pl.BlockSpec((tk, tk), lambda i, j: (0, 0)),      # mask (constant -> DMA'd once)
            pl.BlockSpec((1, n_pad), lambda i, j: (0, 0)),    # one_vars, fully resident
        ],
        out_specs=pl.BlockSpec((tm, tk), lambda i, j: (i, j)),
        scratch_shapes=[pltpu.VMEM((tm, 1), jnp.float32)],    # per-row carry
        compiler_params=pltpu.CompilerParams(
            dimension_semantics=("parallel", "arbitrary")),
    )(x_p, mask, w_p)

    if (m_pad, n_pad) != (m, n):
        out = out[:m, :n]
    return out


def onep_reference(x, one_vars):
    m, n = x.shape
    res = jnp.concatenate(
        [jnp.zeros((m, 1), x.dtype), jnp.cumsum(x[:, :-1], axis=1)], axis=1
    )
    return jax.nn.sigmoid(one_vars * res)


if __name__ == "__main__":
    key = jax.random.PRNGKey(0)

    # --- Test 1: module-sized small shape (single tile). ---
    M, N = 8, 128
    kx, kw, key = jax.random.split(key, 3)
    x = jax.random.normal(kx, (M, N), dtype=jnp.float32)
    # torch.nn.init.normal_(one_vars, mean=0.0, std=1/N)
    one_vars = (1.0 / N) * jax.random.normal(kw, (1, N), dtype=jnp.float32)

    out = jax.block_until_ready(onep_forward(x, one_vars))
    ref = onep_reference(x, one_vars)
    assert out.shape == (M, N)
    assert jnp.allclose(out, ref, atol=1e-5, rtol=1e-5), (
        f"max abs err {jnp.max(jnp.abs(out - ref))}"
    )

    # --- Test 2: tiled / carry path (multiple m- and N-blocks). ---
    M2, N2 = 32, 512
    kx2, kw2, key = jax.random.split(key, 3)
    x2 = jax.random.normal(kx2, (M2, N2), dtype=jnp.float32)
    one_vars2 = (1.0 / N2) * jax.random.normal(kw2, (1, N2), dtype=jnp.float32)

    out2 = jax.block_until_ready(onep_forward(x2, one_vars2, tm=8, tk=128))  # grid (4, 4)
    ref2 = onep_reference(x2, one_vars2)
    assert out2.shape == (M2, N2)
    assert jnp.allclose(out2, ref2, atol=1e-5, rtol=1e-5), (
        f"max abs err {jnp.max(jnp.abs(out2 - ref2))}"
    )

    # --- Test 3: ragged shape exercising the zero-padding path on both dims. ---
    M3, N3 = 13, 200
    kx3, kw3 = jax.random.split(key)
    x3 = jax.random.normal(kx3, (M3, N3), dtype=jnp.float32)
    one_vars3 = (1.0 / N3) * jax.random.normal(kw3, (1, N3), dtype=jnp.float32)

    out3 = jax.block_until_ready(onep_forward(x3, one_vars3))
    ref3 = onep_reference(x3, one_vars3)
    assert out3.shape == (M3, N3)
    assert jnp.allclose(out3, ref3, atol=1e-5, rtol=1e-5), (
        f"max abs err {jnp.max(jnp.abs(out3 - ref3))}"
    )

    print("KERNEL_OK")
</pallas_src>

<mosaic_0001>
module attributes {stable_mosaic.version = 11 : i64} {
  func.func @onep_kernel(%arg0: i32, %arg1: i32, %arg2: memref<8x128xf32, #tpu.memory_space<vmem>>, %arg3: memref<128x128xf32, #tpu.memory_space<vmem>>, %arg4: memref<1x128xf32, #tpu.memory_space<vmem>>, %arg5: memref<8x128xf32, #tpu.memory_space<vmem>>, %arg6: memref<8x1xf32, #tpu.memory_space<vmem>>) attributes {dimension_semantics = [#tpu.dimension_semantics<parallel>, #tpu.dimension_semantics<arbitrary>], iteration_bounds = array<i64: 1, 1>, scalar_prefetch = 0 : i64, scratch_operands = 1 : i64, tpu.core_type = #tpu.core_type<tc>, window_params = [{transform_indices = @transform_0, window_bounds = array<i64: 8, 128>}, {pipeline_mode = #tpu.pipeline_mode<synchronous>, transform_indices = @transform_1, window_bounds = array<i64: 128, 128>}, {pipeline_mode = #tpu.pipeline_mode<synchronous>, transform_indices = @transform_2, window_bounds = array<i64: 1, 128>}, {transform_indices = @transform_3, window_bounds = array<i64: 8, 128>}]} {
    %c0_i32 = arith.constant 0 : i32
    %0 = arith.cmpi eq, %arg1, %c0_i32 : i32
    %1 = arith.extui %0 : i1 to i32
    %c0_i32_0 = arith.constant 0 : i32
    %2 = arith.cmpi ne, %1, %c0_i32_0 : i32
    scf.if %2 {
      %cst_12 = arith.constant 0.000000e+00 : f32
      %25 = vector.broadcast %cst_12 : f32 to vector<8x1xf32>
      %c0_13 = arith.constant 0 : index
      %c0_14 = arith.constant 0 : index
      %26 = vector.load %arg6[%c0_13, %c0_14] : memref<8x1xf32, #tpu.memory_space<vmem>>, vector<8x1xf32>
      tpu.vector_store %arg6[%c0_13, %c0_14], %25 {strides = array<i32>} : memref<8x1xf32, #tpu.memory_space<vmem>>, vector<8x1xf32>,
    } else {
    }
    %c0 = arith.constant 0 : index
    %c0_1 = arith.constant 0 : index
    %3 = vector.load %arg2[%c0, %c0_1] : memref<8x128xf32, #tpu.memory_space<vmem>>, vector<8x128xf32>
    %c0_2 = arith.constant 0 : index
    %c0_3 = arith.constant 0 : index
    %4 = vector.load %arg3[%c0_2, %c0_3] : memref<128x128xf32, #tpu.memory_space<vmem>>, vector<128x128xf32>
    %cst = arith.constant dense<0.000000e+00> : vector<8x128xf32>
    %5 = tpu.matmul %3, %4, %cst {dimension_numbers = #tpu.dot_dimension_numbers<[1], [0], [0], [1], [0, 0, 1, 1], [], []>} : vector<8x128xf32>, vector<128x128xf32>, vector<8x128xf32> -> vector<8x128xf32>
    %c0_4 = arith.constant 0 : index
    %c0_5 = arith.constant 0 : index
    %6 = vector.load %arg6[%c0_4, %c0_5] : memref<8x1xf32, #tpu.memory_space<vmem>>, vector<8x1xf32>
    %7 = vector.broadcast %6 : vector<8x1xf32> to vector<8x128xf32>
    %8 = arith.addf %5, %7 : vector<8x128xf32>
    %c128_i32 = arith.constant 128 : i32
    %9 = arith.muli %arg1, %c128_i32 : i32
    %10 = tpu.assume_multiple %9, 128 : i32
    %c0_6 = arith.constant 0 : index
    %11 = arith.index_cast %10 : i32 to index
    %12 = vector.load %arg4[%c0_6, %11] : memref<1x128xf32, #tpu.memory_space<vmem>>, vector<1x128xf32>
    %13 = vector.broadcast %12 : vector<1x128xf32> to vector<8x128xf32>
    %14 = arith.mulf %13, %8 : vector<8x128xf32>
    %15 = arith.negf %14 : vector<8x128xf32>
    %16 = math.exp %15 : vector<8x128xf32>
    %cst_7 = arith.constant 1.000000e+00 : f32
    %17 = vector.broadcast %cst_7 : f32 to vector<8x128xf32>
    %18 = arith.addf %17, %16 : vector<8x128xf32>
    %19 = arith.divf %17, %18 : vector<8x128xf32>
    %c0_8 = arith.constant 0 : index
    %c0_9 = arith.constant 0 : index
    %20 = vector.load %arg5[%c0_8, %c0_9] : memref<8x128xf32, #tpu.memory_space<vmem>>, vector<8x128xf32>
    tpu.vector_store %arg5[%c0_8, %c0_9], %19 {strides = array<i32>} : memref<8x128xf32, #tpu.memory_space<vmem>>, vector<8x128xf32>,
    %21 = vector.extract_strided_slice %8 {offsets = [0, 127], sizes = [8, 1], strides = [1, 1]} : vector<8x128xf32> to vector<8x1xf32>
    %22 = vector.extract_strided_slice %3 {offsets = [0, 127], sizes = [8, 1], strides = [1, 1]} : vector<8x128xf32> to vector<8x1xf32>
    %23 = arith.addf %21, %22 : vector<8x1xf32>
    %c0_10 = arith.constant 0 : index
    %c0_11 = arith.constant 0 : index
    %24 = vector.load %arg6[%c0_10, %c0_11] : memref<8x1xf32, #tpu.memory_space<vmem>>, vector<8x1xf32>
    tpu.vector_store %arg6[%c0_10, %c0_11], %23 {strides = array<i32>} : memref<8x1xf32, #tpu.memory_space<vmem>>, vector<8x1xf32>,
    return
  }
  func.func @transform_0(%arg0: i32, %arg1: i32) -> (i32, i32) {
    %c0_i32 = arith.constant 0 : i32
    return %arg0, %arg1 : i32, i32
  }
  func.func @transform_1(%arg0: i32, %arg1: i32) -> (i32, i32) {
    %c0_i32 = arith.constant 0 : i32
    %c0_i32_0 = arith.constant 0 : i32
    %c0_i32_1 = arith.constant 0 : i32
    return %c0_i32, %c0_i32_0 : i32, i32
  }
  func.func @transform_2(%arg0: i32, %arg1: i32) -> (i32, i32) {
    %c0_i32 = arith.constant 0 : i32
    %c0_i32_0 = arith.constant 0 : i32
    %c0_i32_1 = arith.constant 0 : i32
    return %c0_i32, %c0_i32_0 : i32, i32
  }
  func.func @transform_3(%arg0: i32, %arg1: i32) -> (i32, i32) {
    %c0_i32 = arith.constant 0 : i32
    return %arg0, %arg1 : i32, i32
  }
}

</mosaic_0001>

<llo_original>
// kernel: tpu_custom_call.1
$region0: #{tpu_custom_call.1}
  #allocation0 [shape = 'u32[]', space=smem, size = 0x4, offset = 0x4, fixed_abs, tag = 'smem constant byte address 0x4 - core index']
  #allocation1 [shape = 'u32[72,128]{1,0:T(1,128)}', space=vmem, size = 0x9000, scoped, tag = 'internal scratch']
  #allocation2 [shape = 'f32[8,1]{1,0:T(8,128)}', space=vmem, size = 0x1000, scoped, tag = 'scratch operand']
  %s0 = inlined_call_operand.hbm [shape: f32[8,128], index: 0, kind: input, shape index: {}]
  %s1 = inlined_call_operand.hbm [shape: f32[128,128], index: 1, kind: input, shape index: {}]
  %s2 = inlined_call_operand.vmem [shape: f32[1,128], index: 2, kind: input, shape index: {}]
  %s3 = inlined_call_operand.hbm [shape: f32[8,128], index: 3, kind: output, shape index: {}]
  %s4 = sld [smem:[#allocation0]]
  $region34: #{tpu_custom_call.1} parent=0
    _
  %s6 = ssub.s32 1, %s4
  %s7 = scalar_select 0, %s6, %s4
  $region1: #{tpu_custom_call.1} parent=0
    #allocation3 [shape = 'u8[4096]{0}', space=vmem, size = 0x1000, scoped, tag = 'input window, operand 0, single buffered']
    #allocation4 [shape = 's32[1]{0}', space=sflag, size = 0x4, scoped, tag = 'scoped memory for tpu_custom_call.1']
    #allocation5 [shape = 's32[1]{0}', space=sflag, size = 0x4, scoped, tag = 'scoped memory for tpu_custom_call.1']
    #allocation6 [shape = 'u8[65536]{0}', space=vmem, size = 0x10000, scoped, tag = 'input window, operand 1, single buffered']
    #allocation7 [shape = 's32[1]{0}', space=sflag, size = 0x4, scoped, tag = 'scoped memory for tpu_custom_call.1']
    #allocation8 [shape = 'u8[4096]{0}', space=vmem, size = 0x1000, scoped, tag = 'output window, operand 0, single buffered']
    %8 = vsyncpa [#allocation4], 0
    %9 = vsyncpa [#allocation7], 0
    %10 = vsyncpa [#allocation5], 0
    // Predicated region
    $region2: #{tpu_custom_call.1} parent=1 // pred_check
      _
    $region3: #{tpu_custom_call.1} parent=1 // pred_check_branch
      %12 = sbr.rel (0) target = $region5
    $region4: #{tpu_custom_call.1} parent=1 // pred_region
      %14 = vsyncadd [#allocation4], 0
      %s16 = sshll.u32 %s0, 4
      %s17 = int_to_ptr.hbm [resolvable:$true] %s16
      %s18 = sshll.u32 [#allocation3], 4
      %s19 = int_to_ptr.vmem [resolvable:$true] %s18
      %21 = dma.hbm_to_vmem [thread:$0]  %s17, 128, %s19, [#allocation4]
    $region5: #{tpu_custom_call.1} parent=1 // pred_fallthru
      _
    // Predicated region
    $region6: #{tpu_custom_call.1} parent=1 // pred_check
      _
    $region7: #{tpu_custom_call.1} parent=1 // pred_check_branch
      %23 = sbr.rel (0) target = $region9
    $region8: #{tpu_custom_call.1} parent=1 // pred_region
      %25 = vsyncadd [#allocation7], 0
      %s26 = sshll.u32 %s1, 4
      %s27 = int_to_ptr.hbm [resolvable:$true] %s26
      %s28 = sshll.u32 [#allocation6], 4
      %s29 = int_to_ptr.vmem [resolvable:$true] %s28
      %34 = dma.hbm_to_vmem [thread:$0]  %s27, 2048, %s29, [#allocation7], 128, 128, 8
    $region9: #{tpu_custom_call.1} parent=1 // pred_fallthru
      _
    // Predicated region
    $region10: #{tpu_custom_call.1} parent=1 // pred_check
      _
    $region11: #{tpu_custom_call.1} parent=1 // pred_check_branch
      %36 = sbr.rel (0) target = $region13
    $region12: #{tpu_custom_call.1} parent=1 // pred_region
      _
    $region13: #{tpu_custom_call.1} parent=1 // pred_fallthru
      _
    // Predicated region
    $region14: #{tpu_custom_call.1} parent=1 // pred_check
      _
    $region15: #{tpu_custom_call.1} parent=1 // pred_check_branch
      %38 = sbr.rel (0) target = $region17
    $region16: #{tpu_custom_call.1} parent=1 // pred_region
      %40 = dma.done [#allocation4], 128
    $region17: #{tpu_custom_call.1} parent=1 // pred_fallthru
      _
    // Predicated region
    $region18: #{tpu_custom_call.1} parent=1 // pred_check
      _
    $region19: #{tpu_custom_call.1} parent=1 // pred_check_branch
      %42 = sbr.rel (0) target = $region21
    $region20: #{tpu_custom_call.1} parent=1 // pred_region
      %44 = dma.done [#allocation7], 2048
    $region21: #{tpu_custom_call.1} parent=1 // pred_fallthru
      _
    %p45 = scmp.eq.s32.totalorder 0, 0
    // Predicated region
    $region22: #{tpu_custom_call.1} parent=1 // pred_check
      %p46 = pneg %p45
    $region23: #{tpu_custom_call.1} parent=1 // pred_check_branch
      %48 = sbr.rel (%p46) target = $region25
    $region24: #{tpu_custom_call.1} parent=1 // pred_region
      %vm49 = vcmask 7168
      %50 = vst.msk [vmem:[#allocation2] sm:$0xff] %vm49, 0.0
    $region25: #{tpu_custom_call.1} parent=1 // pred_fallthru
      _
    %v51 = vld [vmem:[#allocation3] sm:$0xff]
    %v52 = vld [vmem:[#allocation6] sm:$0xff]
    %v53 = vld [vmem:[#allocation6 + $0x8] sm:$0xff]
    %v54 = vld [vmem:[#allocation6 + $0x10] sm:$0xff]
    %v55 = vld [vmem:[#allocation6 + $0x18] sm:$0xff]
    %v56 = vld [vmem:[#allocation6 + $0x20] sm:$0xff]
    %v57 = vld [vmem:[#allocation6 + $0x28] sm:$0xff]
    %v58 = vld [vmem:[#allocation6 + $0x30] sm:$0xff]
    %v59 = vld [vmem:[#allocation6 + $0x38] sm:$0xff]
    %v60 = vld [vmem:[#allocation6 + $0x40] sm:$0xff]
    %v61 = vld [vmem:[#allocation6 + $0x48] sm:$0xff]
    %v62 = vld [vmem:[#allocation6 + $0x50] sm:$0xff]
    %v63 = vld [vmem:[#allocation6 + $0x58] sm:$0xff]
    %v64 = vld [vmem:[#allocation6 + $0x60] sm:$0xff]
    %v65 = vld [vmem:[#allocation6 + $0x68] sm:$0xff]
    %v66 = vld [vmem:[#allocation6 + $0x70] sm:$0xff]
    %v67 = vld [vmem:[#allocation6 + $0x78] sm:$0xff]
    %v68 = vld [vmem:[#allocation2] sm:$0xff]
    %70 = vset.pattern.permute.xlu0 0
    %71 = vperm.xlu0 %70, %v68
    %v72 = vpop.permute.xlu0 %71
    %74 = vmatpush.msra.mxu0 %v67
    %75 = vmatpush.msra.mxu0 %v66
    %76 = vmatpush.msra.mxu0 %v65
    %77 = vmatpush.msra.mxu0 %v64
    %78 = vmatpush.msra.mxu0 %v63
    %79 = vmatpush.msra.mxu0 %v62
    %80 = vmatpush.msra.mxu0 %v61
    %81 = vmatpush.msra.mxu0 %v60
    %82 = vmatpush.msra.mxu0 %v59
    %83 = vmatpush.msra.mxu0 %v58
    %84 = vmatpush.msra.mxu0 %v57
    %85 = vmatpush.msra.mxu0 %v56
    %86 = vmatpush.msra.mxu0 %v55
    %87 = vmatpush.msra.mxu0 %v54
    %88 = vmatpush.msra.mxu0 %v53
    %89 = vmatpush.msra.mxu0 %v52
    %90 = vmatmul.f32.gmra.mxu0 %v51
    %v91 = vpop.f32.mrf.mxu0
    %v92 = vadd.f32 %v72, %v91
    %93 = vdwg.mxu0
    %s94 = smul.u32 0, 128
    %s95 = sshra.s32 %s94, 7
    %s96 = sand.u32 %s94, 127
    %s97 = scalar_lea.vmem %s2, %s95
    %v98 = vld [vmem:[%s97] sm:$0x1]
    %v100 = vperm.slane %v98, 0
    %v102 = vmul.f32 %v100, %v92
    %v103 = vxor.u32 %v102, 2147483648
    %v104 = vmul.f32 %v103, 1.442695
    %v105 = vpow.pop %v104
    %v106 = vadd.f32 %v105, 1.0
    %v107 = vrcp.pop %v106
    %v108 = vmul.f32 %v106, %v107
    %v109 = vsub.f32 1.0, %v108
    %v110 = vmul.f32 %v107, %v109
    %v111 = vadd.f32 %v107, %v110
    %vm112 = vweird.f32 %v106
    %vm113 = vweird.f32 %v107
    %vm114 = vmor %vm112, %vm113
    %v115 = vsel %vm114, %v107, %v111
    %v116 = vand.u32 2147483647, %v106
    %vm117 = vcmp.eq.f32.partialorder %v116, 8.507059e+37
    %v118 = vand.u32 %v106, 2147483648
    %v119 = vor.u32 1.1754944e-38, %v118
    %v120 = vsel %vm117, %v119, %v115
    %v121 = vmul.f32 1.0, %v120
    %122 = vst [vmem:[#allocation8] sm:$0xff] %v121
    %v123 = vadd.f32 %v92, %v51
    %125 = vrot.lane.b32.xlu0 %v123, 1
    %v126 = vpop.permute.xlu0 %125
    %vm128 = vcmask 7168
    %129 = vst.msk [vmem:[#allocation2] sm:$0xff] %vm128, %v126
    // Predicated region
    $region26: #{tpu_custom_call.1} parent=1 // pred_check
      _
    $region27: #{tpu_custom_call.1} parent=1 // pred_check_branch
      %131 = sbr.rel (0) target = $region29
    $region28: #{tpu_custom_call.1} parent=1 // pred_region
      %133 = vsyncadd [#allocation5], 0
      %s135 = sshll.u32 [#allocation8], 4
      %s136 = int_to_ptr.vmem [resolvable:$true] %s135
      %s137 = sshll.u32 %s3, 4
      %s138 = int_to_ptr.hbm [resolvable:$true] %s137
      %140 = dma.vmem_to_hbm [thread:$0]  %s136, 128, %s138, [#allocation5]
    $region29: #{tpu_custom_call.1} parent=1 // pred_fallthru
      _
    // Predicated region
    $region30: #{tpu_custom_call.1} parent=1 // pred_check
      _
    $region31: #{tpu_custom_call.1} parent=1 // pred_check_branch
      %142 = sbr.rel (0) target = $region33
    $region32: #{tpu_custom_call.1} parent=1 // pred_region
      %144 = dma.done [#allocation5], 128
    $region33: #{tpu_custom_call.1} parent=1 // pred_fallthru
      _
    %145 = vsyncpa [#allocation4], 1
    %146 = vsyncpa [#allocation7], 1
    %147 = vsyncpa [#allocation5], 1

</llo_original>
